<compile_context>
chip_gen: v7x
topology: tpu7x:2x2x1
jax: 0.10.0
libtpu: 0.0.40
codegen_flags: <defaults>
</compile_context>

<pallas_src>
import functools

import jax
import jax.numpy as jnp
from jax.experimental import pallas as pl
from jax.experimental.pallas import tpu as pltpu


def _round_up(x, m):
    return ((x + m - 1) // m) * m


# ----------------------------------------------------------------------------
# Pallas kernel: per-pixel MLP (stack of InvertedResidual blocks) + sigmoid
# ----------------------------------------------------------------------------
def _decoder_kernel(b1_ref, wx_ref, wy_ref, *refs, height, width):
    out_ref = refs[-1]       # (1, out_c, tile_n) f32
    params = refs[:-1]       # [wg0,b20,w30,b30] + 6 per remaining block

    tile_n = out_ref.shape[-1]
    tile_start = pl.program_id(1) * tile_n

    # ---- CoordConv features, generated in-kernel (pixels on lanes) --------
    lane = jax.lax.broadcasted_iota(jnp.int32, (1, tile_n), 1)
    p = lane + tile_start
    # p // width and p % width without vector integer division: f32 reciprocal
    # + truncation, then an exact one-step fix-up.  Exact while the flat pixel
    # index fits f32's 24-bit mantissa (guarded in the wrapper).
    p_f = p.astype(jnp.float32)
    py = (p_f * jnp.float32(1.0 / width)).astype(jnp.int32)
    py = jnp.where(py * width > p, py - 1, py)
    py = jnp.where((py + 1) * width <= p, py + 1, py)
    px = p - py * width

    wd = max(width - 1, 1)
    hd = max(height - 1, 1)
    x_row = px.astype(jnp.float32) * jnp.float32(2.0 / wd) - 1.0   # varies along W
    y_row = py.astype(jnp.float32) * jnp.float32(2.0 / hd) - 1.0   # varies along H

    # ---- Layer 1 (K = 2+z_dim) on the VPU: z already folded into b1_eff ---
    # h = relu(W1[:,0:1]*x + W1[:,1:2]*y + (b1 + W1[:,2:] @ z[b]))
    h = jnp.maximum(wx_ref[...] * x_row + wy_ref[...] * y_row + b1_ref[0], 0.0)

    # ---- Remaining 1x1 convs: bf16 operands on the MXU, f32 accumulate ----
    def dense_relu(w_ref, b_ref, hh):
        acc = jnp.dot(w_ref[...], hh.astype(jnp.bfloat16),
                      preferred_element_type=jnp.float32)
        return jnp.maximum(acc + b_ref[...], 0.0)

    wg0, b20, w30, b30 = params[0:4]
    h = dense_relu(wg0, b20, h)      # grouped conv (block-diag dense) + BN + ReLU
    h = dense_relu(w30, b30, h)      # projection conv + BN + ReLU

    rest = params[4:]
    for blk in range(len(rest) // 6):
        w1, b1, wg, b2, w3, b3 = rest[blk * 6:(blk + 1) * 6]
        h = dense_relu(w1, b1, h)
        h = dense_relu(wg, b2, h)
        h = dense_relu(w3, b3, h)

    # Lane-dense (out_c, tile_n) store; output already channel-major (NC(HW)).
    out_ref[0] = jax.nn.sigmoid(h)


# ----------------------------------------------------------------------------
# Wrapper: tile selection + pallas_call
# ----------------------------------------------------------------------------
def _pick_tile_n(hw, max_tile):
    """Largest multiple of 128 <= max_tile that divides hw (else round-up)."""
    hw_pad_min = _round_up(hw, 128)
    upper = max(128, min(max_tile, hw_pad_min) // 128 * 128)
    for t in range(upper, 127, -128):
        if hw % t == 0:
            return t
    return upper


def decoder_pallas(b1_eff, wx, wy, mats, out_c, height, width):
    """b1_eff: (B, hidden0, 1) f32; wx/wy: (hidden0, 1) f32;
    mats: [wg0(bf16), b20(f32), w30(bf16), b30(f32), then 6 per extra block]."""
    batch, hidden0, _ = b1_eff.shape
    hw = height * width

    # Generation-aware VMEM budget (v7x has 64 MiB/core vs 128 MiB on v5e/v6e).
    try:
        vmem_cap = int(pltpu.get_tpu_info().vmem_capacity_bytes)
    except Exception:
        vmem_cap = 64 * 1024 * 1024          # conservative fallback
    vmem_limit = int(min(vmem_cap * 3 // 4, 96 * 1024 * 1024))

    hidden_max = max([hidden0] + [m.shape[0] for m in mats[0::2]])
    weight_bytes = 2 * sum(int(p.size) * p.dtype.itemsize for p in mats)
    budget = max(vmem_limit // 3 - weight_bytes, 512 * 1024)
    # ~2 live f32 activation slabs + bf16 cast copy + double-buffered f32 output.
    bytes_per_lane = 16 * hidden_max + 8 * out_c + 32
    max_tile = max(128, (budget // bytes_per_lane) // 128 * 128)

    tile_n = _pick_tile_n(hw, max_tile)
    num_tiles = pl.cdiv(hw, tile_n)
    hw_pad = num_tiles * tile_n
    # Guard for the f32-reciprocal integer division used in-kernel.
    assert hw_pad < (1 << 24), "image too large for in-kernel f32 index math"

    in_specs = [
        pl.BlockSpec((1, hidden0, 1), lambda b, t: (b, 0, 0)),   # b1_eff (per-batch)
        pl.BlockSpec((hidden0, 1), lambda b, t: (0, 0)),         # wx
        pl.BlockSpec((hidden0, 1), lambda b, t: (0, 0)),         # wy
    ]
    for prm in mats:
        in_specs.append(pl.BlockSpec(prm.shape, lambda b, t: (0, 0)))
    out_spec = pl.BlockSpec((1, out_c, tile_n), lambda b, t: (b, 0, t))

    kernel = functools.partial(_decoder_kernel, height=height, width=width)
    out = pl.pallas_call(
        kernel,
        out_shape=jax.ShapeDtypeStruct((batch, out_c, hw_pad), jnp.float32),
        grid_spec=pltpu.PrefetchScalarGridSpec(
            num_scalar_prefetch=0,
            grid=(batch, num_tiles),
            in_specs=in_specs,
            out_specs=out_spec),
        compiler_params=pltpu.CompilerParams(
            dimension_semantics=("parallel", "parallel"),
            vmem_limit_bytes=vmem_limit),
    )(b1_eff, wx, wy, *mats)
    if hw_pad != hw:
        out = out[:, :, :hw]
    return out


# ----------------------------------------------------------------------------
# Parameter construction (deterministic, mirrors Decoder.__init__ shapes)
# ----------------------------------------------------------------------------
def _fold_bn(key, c):
    """Eval-mode BatchNorm folded into per-channel (scale, bias), shape (c,)."""
    k1, k2, k3, k4 = jax.random.split(key, 4)
    gamma = 1.0 + 0.1 * jax.random.normal(k1, (c,), jnp.float32)
    beta = 0.1 * jax.random.normal(k2, (c,), jnp.float32)
    mean = 0.05 * jax.random.normal(k3, (c,), jnp.float32)
    var = jax.random.uniform(k4, (c,), jnp.float32, 0.5, 1.5)
    scale = gamma / jnp.sqrt(var + 1e-5)
    bias = beta - mean * scale
    return scale, bias


def make_decoder_params(key, z_dim, channels, expand_ratio=6):
    """Builds the reversed channel ladder exactly like Decoder.__init__.

    Weights kept in PyTorch conv orientation (out, in), f32, with the eval-mode
    BN scale folded into rows; bias kept as a (C, 1) lane-broadcast column.
    """
    chans = list(channels)
    input_dim = 2 + z_dim            # label_dim == 0 path
    chans.append(input_dim)
    chans.reverse()                  # e.g. [2+z_dim, ..., channels[0]]

    params = []
    for i in range(len(chans) - 1):
        in_c, out_c = chans[i], chans[i + 1]
        hidden = round(in_c * expand_ratio)
        gsz = hidden // in_c         # channels per group (== expand_ratio)
        key, k1, k2, k3, kb1, kb2, kb3 = jax.random.split(key, 7)

        # Conv2d(in_c, hidden, 1, bias=False)
        w1 = 0.3 * jax.random.normal(k1, (hidden, in_c), jnp.float32)
        # Conv2d(hidden, hidden, 1, groups=in_c, bias=False)
        wg_conv = 0.3 * jax.random.normal(k2, (hidden, gsz), jnp.float32)
        # Conv2d(hidden, out_c, 1, bias=False)
        w3 = 0.3 * jax.random.normal(k3, (out_c, hidden), jnp.float32)

        # grouped 1x1 conv -> block-diagonal dense (out, in)
        wg = jnp.zeros((hidden, hidden), jnp.float32)
        for g in range(in_c):
            sl = slice(g * gsz, (g + 1) * gsz)
            wg = wg.at[sl, sl].set(wg_conv[sl, :])

        s1, b1 = _fold_bn(kb1, hidden)
        s2, b2 = _fold_bn(kb2, hidden)
        s3, b3 = _fold_bn(kb3, out_c)

        params += [w1 * s1[:, None], b1[:, None],
                   wg * s2[:, None], b2[:, None],
                   w3 * s3[:, None], b3[:, None]]
    return params, chans


# ----------------------------------------------------------------------------
# Full Decoder.forward (tiny glue in plain JAX, everything else in the kernel)
# ----------------------------------------------------------------------------
def decoder_forward(z, image_size, params_flat, chans):
    if isinstance(image_size, int):
        height = width = image_size
    else:
        height, width = image_size
    batch = z.shape[0]
    out_c = chans[-1]
    z = z.astype(jnp.float32)

    # First layer split: coord columns stay f32 (VPU FMAs in-kernel); the z
    # contribution is folded into a per-batch bias column (no MXU for layer 1).
    w1_0 = params_flat[0]                      # (hidden0, 2+z_dim), BN folded
    b1_0 = params_flat[1]                      # (hidden0, 1)
    wx = w1_0[:, 0:1]
    wy = w1_0[:, 1:2]
    b1_eff = b1_0[None, :, :] + jnp.einsum('oi,bi->bo', w1_0[:, 2:], z)[:, :, None]

    # Remaining params: weight matrices -> bf16 for the MXU; biases stay f32.
    mats = [p.astype(jnp.bfloat16) if i % 2 == 0 else p
            for i, p in enumerate(params_flat[2:])]

    out = decoder_pallas(b1_eff, wx, wy, mats, out_c, height, width)
    # Kernel output is already channel-major (B, out_c, H*W): reshape only.
    return out.reshape(batch, out_c, height, width)


def decoder_reference(z, image_size, params_flat, chans):
    """Pure-JAX f32 reference of the original module's math."""
    if isinstance(image_size, int):
        height = width = image_size
    else:
        height, width = image_size
    batch, z_dim = z.shape
    wd = max(width - 1, 1)
    hd = max(height - 1, 1)
    xs = jnp.arange(width, dtype=jnp.float32) * jnp.float32(2.0 / wd) - 1.0
    ys = jnp.arange(height, dtype=jnp.float32) * jnp.float32(2.0 / hd) - 1.0
    x_grid = jnp.broadcast_to(xs[None, :], (height, width))
    y_grid = jnp.broadcast_to(ys[:, None], (height, width))
    xy = jnp.broadcast_to(jnp.stack([x_grid, y_grid], 0)[None],
                          (batch, 2, height, width))
    z_map = jnp.broadcast_to(z[:, :, None, None], (batch, z_dim, height, width))
    h = jnp.concatenate([xy, z_map], axis=1).reshape(batch, 2 + z_dim, -1)

    num_blocks = len(params_flat) // 6
    for blk in range(num_blocks):
        w1, b1, wg, b2, w3, b3 = params_flat[blk * 6:(blk + 1) * 6]
        h = jnp.maximum(jnp.einsum('oi,bip->bop', w1, h) + b1[None], 0.0)
        h = jnp.maximum(jnp.einsum('oi,bip->bop', wg, h) + b2[None], 0.0)
        h = jnp.maximum(jnp.einsum('oi,bip->bop', w3, h) + b3[None], 0.0)
    h = jax.nn.sigmoid(h)
    return h.reshape(batch, chans[-1], height, width)


if __name__ == "__main__":
    key = jax.random.PRNGKey(0)
    k_z, k_p = jax.random.split(key)

    z_dim = 3
    channels = [4, 8]          # Decoder(z_dim=3, channels=[4, 8]) -> output C=4
    batch = 2
    image_size = 16            # H = W = 16

    params_flat, chans = make_decoder_params(k_p, z_dim, channels)
    z = jax.random.normal(k_z, (batch, z_dim), jnp.float32)

    image = decoder_forward(z, image_size, params_flat, chans)
    image = jax.block_until_ready(image)

    ref = decoder_reference(z, image_size, params_flat, chans)
    assert image.shape == (batch, channels[0], image_size, image_size)
    # Tolerance loosened vs the pure-f32 reference: MXU operands are bf16.
    assert jnp.allclose(image, ref, atol=2e-2, rtol=2e-2), (
        float(jnp.max(jnp.abs(image - ref))))

    print("KERNEL_OK")
</pallas_src>

<mosaic_0001>
module attributes {stable_mosaic.version = 11 : i64} {
  func.func @_decoder_kernel(%arg0: i32, %arg1: i32, %arg2: memref<1x30x1xf32, #tpu.memory_space<vmem>>, %arg3: memref<30x1xf32, #tpu.memory_space<vmem>>, %arg4: memref<30x1xf32, #tpu.memory_space<vmem>>, %arg5: memref<30x30xbf16, #tpu.memory_space<vmem>>, %arg6: memref<30x1xf32, #tpu.memory_space<vmem>>, %arg7: memref<8x30xbf16, #tpu.memory_space<vmem>>, %arg8: memref<8x1xf32, #tpu.memory_space<vmem>>, %arg9: memref<48x8xbf16, #tpu.memory_space<vmem>>, %arg10: memref<48x1xf32, #tpu.memory_space<vmem>>, %arg11: memref<48x48xbf16, #tpu.memory_space<vmem>>, %arg12: memref<48x1xf32, #tpu.memory_space<vmem>>, %arg13: memref<4x48xbf16, #tpu.memory_space<vmem>>, %arg14: memref<4x1xf32, #tpu.memory_space<vmem>>, %arg15: memref<1x4x256xf32, #tpu.memory_space<vmem>>) attributes {dimension_semantics = [#tpu.dimension_semantics<parallel>, #tpu.dimension_semantics<parallel>], iteration_bounds = array<i64: 2, 1>, scalar_prefetch = 0 : i64, scratch_operands = 0 : i64, tpu.core_type = #tpu.core_type<tc>, window_params = [{transform_indices = @transform_0, window_bounds = array<i64: 1, 30, 1>}, {pipeline_mode = #tpu.pipeline_mode<synchronous>, transform_indices = @transform_1, window_bounds = array<i64: 30, 1>}, {pipeline_mode = #tpu.pipeline_mode<synchronous>, transform_indices = @transform_2, window_bounds = array<i64: 30, 1>}, {pipeline_mode = #tpu.pipeline_mode<synchronous>, transform_indices = @transform_3, window_bounds = array<i64: 30, 30>}, {pipeline_mode = #tpu.pipeline_mode<synchronous>, transform_indices = @transform_4, window_bounds = array<i64: 30, 1>}, {pipeline_mode = #tpu.pipeline_mode<synchronous>, transform_indices = @transform_5, window_bounds = array<i64: 8, 30>}, {pipeline_mode = #tpu.pipeline_mode<synchronous>, transform_indices = @transform_6, window_bounds = array<i64: 8, 1>}, {pipeline_mode = #tpu.pipeline_mode<synchronous>, transform_indices = @transform_7, window_bounds = array<i64: 48, 8>}, {pipeline_mode = #tpu.pipeline_mode<synchronous>, transform_indices = @transform_8, window_bounds = array<i64: 48, 1>}, {pipeline_mode = #tpu.pipeline_mode<synchronous>, transform_indices = @transform_9, window_bounds = array<i64: 48, 48>}, {pipeline_mode = #tpu.pipeline_mode<synchronous>, transform_indices = @transform_10, window_bounds = array<i64: 48, 1>}, {pipeline_mode = #tpu.pipeline_mode<synchronous>, transform_indices = @transform_11, window_bounds = array<i64: 4, 48>}, {pipeline_mode = #tpu.pipeline_mode<synchronous>, transform_indices = @transform_12, window_bounds = array<i64: 4, 1>}, {transform_indices = @transform_13, window_bounds = array<i64: 1, 4, 256>}]} {
    %c256_i32 = arith.constant 256 : i32
    %0 = arith.muli %arg1, %c256_i32 : i32
    %1 = tpu.iota {dimensions = array<i32: 1>} : vector<1x256xi32>
    %2 = vector.broadcast %0 : i32 to vector<1x256xi32>
    %3 = arith.addi %1, %2 : vector<1x256xi32>
    %4 = arith.sitofp %3 : vector<1x256xi32> to vector<1x256xf32>
    %cst = arith.constant 6.250000e-02 : f32
    %5 = vector.broadcast %cst : f32 to vector<1x256xf32>
    %6 = arith.mulf %4, %5 : vector<1x256xf32>
    %7 = arith.fptosi %6 : vector<1x256xf32> to vector<1x256xi32>
    %c16_i32 = arith.constant 16 : i32
    %8 = vector.broadcast %c16_i32 : i32 to vector<1x256xi32>
    %9 = arith.muli %7, %8 : vector<1x256xi32>
    %10 = arith.cmpi sgt, %9, %3 : vector<1x256xi32>
    %c1_i32 = arith.constant 1 : i32
    %11 = vector.broadcast %c1_i32 : i32 to vector<1x256xi32>
    %12 = arith.subi %7, %11 : vector<1x256xi32>
    %13 = arith.select %10, %12, %7 : vector<1x256xi1>, vector<1x256xi32>
    %c1_i32_0 = arith.constant 1 : i32
    %14 = vector.broadcast %c1_i32_0 : i32 to vector<1x256xi32>
    %15 = arith.addi %13, %14 : vector<1x256xi32>
    %c16_i32_1 = arith.constant 16 : i32
    %16 = vector.broadcast %c16_i32_1 : i32 to vector<1x256xi32>
    %17 = arith.muli %15, %16 : vector<1x256xi32>
    %18 = arith.cmpi sle, %17, %3 : vector<1x256xi32>
    %c1_i32_2 = arith.constant 1 : i32
    %19 = vector.broadcast %c1_i32_2 : i32 to vector<1x256xi32>
    %20 = arith.addi %13, %19 : vector<1x256xi32>
    %21 = arith.select %18, %20, %13 : vector<1x256xi1>, vector<1x256xi32>
    %c16_i32_3 = arith.constant 16 : i32
    %22 = vector.broadcast %c16_i32_3 : i32 to vector<1x256xi32>
    %23 = arith.muli %21, %22 : vector<1x256xi32>
    %24 = arith.subi %3, %23 : vector<1x256xi32>
    %25 = arith.sitofp %24 : vector<1x256xi32> to vector<1x256xf32>
    %cst_4 = arith.constant 0.13333334 : f32
    %26 = vector.broadcast %cst_4 : f32 to vector<1x256xf32>
    %27 = arith.mulf %25, %26 : vector<1x256xf32>
    %cst_5 = arith.constant 1.000000e+00 : f32
    %28 = vector.broadcast %cst_5 : f32 to vector<1x256xf32>
    %29 = arith.subf %27, %28 : vector<1x256xf32>
    %30 = arith.sitofp %21 : vector<1x256xi32> to vector<1x256xf32>
    %cst_6 = arith.constant 0.13333334 : f32
    %31 = vector.broadcast %cst_6 : f32 to vector<1x256xf32>
    %32 = arith.mulf %30, %31 : vector<1x256xf32>
    %cst_7 = arith.constant 1.000000e+00 : f32
    %33 = vector.broadcast %cst_7 : f32 to vector<1x256xf32>
    %34 = arith.subf %32, %33 : vector<1x256xf32>
    %c0 = arith.constant 0 : index
    %c0_8 = arith.constant 0 : index
    %35 = vector.load %arg3[%c0, %c0_8] : memref<30x1xf32, #tpu.memory_space<vmem>>, vector<30x1xf32>
    %36 = vector.broadcast %35 : vector<30x1xf32> to vector<30x256xf32>
    %37 = vector.broadcast %29 : vector<1x256xf32> to vector<30x256xf32>
    %38 = arith.mulf %36, %37 : vector<30x256xf32>
    %c0_9 = arith.constant 0 : index
    %c0_10 = arith.constant 0 : index
    %39 = vector.load %arg4[%c0_9, %c0_10] : memref<30x1xf32, #tpu.memory_space<vmem>>, vector<30x1xf32>
    %40 = vector.broadcast %39 : vector<30x1xf32> to vector<30x256xf32>
    %41 = vector.broadcast %34 : vector<1x256xf32> to vector<30x256xf32>
    %42 = arith.mulf %40, %41 : vector<30x256xf32>
    %43 = arith.addf %38, %42 : vector<30x256xf32>
    %c0_11 = arith.constant 0 : index
    %c0_12 = arith.constant 0 : index
    %c0_13 = arith.constant 0 : index
    %44 = vector.load %arg2[%c0_11, %c0_12, %c0_13] : memref<1x30x1xf32, #tpu.memory_space<vmem>>, vector<1x30x1xf32>
    %45 = vector.shape_cast %44 : vector<1x30x1xf32> to vector<30x1xf32>
    %46 = vector.broadcast %45 : vector<30x1xf32> to vector<30x256xf32>
    %47 = arith.addf %43, %46 : vector<30x256xf32>
    %cst_14 = arith.constant 0.000000e+00 : f32
    %48 = vector.broadcast %cst_14 : f32 to vector<30x256xf32>
    %49 = arith.maximumf %47, %48 : vector<30x256xf32>
    %c0_15 = arith.constant 0 : index
    %c0_16 = arith.constant 0 : index
    %50 = vector.load %arg5[%c0_15, %c0_16] : memref<30x30xbf16, #tpu.memory_space<vmem>>, vector<30x30xbf16>
    %51 = arith.truncf %49 : vector<30x256xf32> to vector<30x256xbf16>
    %cst_17 = arith.constant dense<0.000000e+00> : vector<30x256xf32>
    %52 = tpu.matmul %50, %51, %cst_17 {dimension_numbers = #tpu.dot_dimension_numbers<[1], [0], [0], [1], [0, 0, 1, 1], [], []>} : vector<30x30xbf16>, vector<30x256xbf16>, vector<30x256xf32> -> vector<30x256xf32>
    %c0_18 = arith.constant 0 : index
    %c0_19 = arith.constant 0 : index
    %53 = vector.load %arg6[%c0_18, %c0_19] : memref<30x1xf32, #tpu.memory_space<vmem>>, vector<30x1xf32>
    %54 = vector.broadcast %53 : vector<30x1xf32> to vector<30x256xf32>
    %55 = arith.addf %52, %54 : vector<30x256xf32>
    %cst_20 = arith.constant 0.000000e+00 : f32
    %56 = vector.broadcast %cst_20 : f32 to vector<30x256xf32>
    %57 = arith.maximumf %55, %56 : vector<30x256xf32>
    %c0_21 = arith.constant 0 : index
    %c0_22 = arith.constant 0 : index
    %58 = vector.load %arg7[%c0_21, %c0_22] : memref<8x30xbf16, #tpu.memory_space<vmem>>, vector<8x30xbf16>
    %59 = arith.truncf %57 : vector<30x256xf32> to vector<30x256xbf16>
    %cst_23 = arith.constant dense<0.000000e+00> : vector<8x256xf32>
    %60 = tpu.matmul %58, %59, %cst_23 {dimension_numbers = #tpu.dot_dimension_numbers<[1], [0], [0], [1], [0, 0, 1, 1], [], []>} : vector<8x30xbf16>, vector<30x256xbf16>, vector<8x256xf32> -> vector<8x256xf32>
    %c0_24 = arith.constant 0 : index
    %c0_25 = arith.constant 0 : index
    %61 = vector.load %arg8[%c0_24, %c0_25] : memref<8x1xf32, #tpu.memory_space<vmem>>, vector<8x1xf32>
    %62 = vector.broadcast %61 : vector<8x1xf32> to vector<8x256xf32>
    %63 = arith.addf %60, %62 : vector<8x256xf32>
    %cst_26 = arith.constant 0.000000e+00 : f32
    %64 = vector.broadcast %cst_26 : f32 to vector<8x256xf32>
    %65 = arith.maximumf %63, %64 : vector<8x256xf32>
    %c0_27 = arith.constant 0 : index
    %c0_28 = arith.constant 0 : index
    %66 = vector.load %arg9[%c0_27, %c0_28] : memref<48x8xbf16, #tpu.memory_space<vmem>>, vector<48x8xbf16>
    %67 = arith.truncf %65 : vector<8x256xf32> to vector<8x256xbf16>
    %cst_29 = arith.constant dense<0.000000e+00> : vector<48x256xf32>
    %68 = tpu.matmul %66, %67, %cst_29 {dimension_numbers = #tpu.dot_dimension_numbers<[1], [0], [0], [1], [0, 0, 1, 1], [], []>} : vector<48x8xbf16>, vector<8x256xbf16>, vector<48x256xf32> -> vector<48x256xf32>
    %c0_30 = arith.constant 0 : index
    %c0_31 = arith.constant 0 : index
    %69 = vector.load %arg10[%c0_30, %c0_31] : memref<48x1xf32, #tpu.memory_space<vmem>>, vector<48x1xf32>
    %70 = vector.broadcast %69 : vector<48x1xf32> to vector<48x256xf32>
    %71 = arith.addf %68, %70 : vector<48x256xf32>
    %cst_32 = arith.constant 0.000000e+00 : f32
    %72 = vector.broadcast %cst_32 : f32 to vector<48x256xf32>
    %73 = arith.maximumf %71, %72 : vector<48x256xf32>
    %c0_33 = arith.constant 0 : index
    %c0_34 = arith.constant 0 : index
    %74 = vector.load %arg11[%c0_33, %c0_34] : memref<48x48xbf16, #tpu.memory_space<vmem>>, vector<48x48xbf16>
    %75 = arith.truncf %73 : vector<48x256xf32> to vector<48x256xbf16>
    %cst_35 = arith.constant dense<0.000000e+00> : vector<48x256xf32>
    %76 = tpu.matmul %74, %75, %cst_35 {dimension_numbers = #tpu.dot_dimension_numbers<[1], [0], [0], [1], [0, 0, 1, 1], [], []>} : vector<48x48xbf16>, vector<48x256xbf16>, vector<48x256xf32> -> vector<48x256xf32>
    %c0_36 = arith.constant 0 : index
    %c0_37 = arith.constant 0 : index
    %77 = vector.load %arg12[%c0_36, %c0_37] : memref<48x1xf32, #tpu.memory_space<vmem>>, vector<48x1xf32>
    %78 = vector.broadcast %77 : vector<48x1xf32> to vector<48x256xf32>
    %79 = arith.addf %76, %78 : vector<48x256xf32>
    %cst_38 = arith.constant 0.000000e+00 : f32
    %80 = vector.broadcast %cst_38 : f32 to vector<48x256xf32>
    %81 = arith.maximumf %79, %80 : vector<48x256xf32>
    %c0_39 = arith.constant 0 : index
    %c0_40 = arith.constant 0 : index
    %82 = vector.load %arg13[%c0_39, %c0_40] : memref<4x48xbf16, #tpu.memory_space<vmem>>, vector<4x48xbf16>
    %83 = arith.truncf %81 : vector<48x256xf32> to vector<48x256xbf16>
    %cst_41 = arith.constant dense<0.000000e+00> : vector<4x256xf32>
    %84 = tpu.matmul %82, %83, %cst_41 {dimension_numbers = #tpu.dot_dimension_numbers<[1], [0], [0], [1], [0, 0, 1, 1], [], []>} : vector<4x48xbf16>, vector<48x256xbf16>, vector<4x256xf32> -> vector<4x256xf32>
    %c0_42 = arith.constant 0 : index
    %c0_43 = arith.constant 0 : index
    %85 = vector.load %arg14[%c0_42, %c0_43] : memref<4x1xf32, #tpu.memory_space<vmem>>, vector<4x1xf32>
    %86 = vector.broadcast %85 : vector<4x1xf32> to vector<4x256xf32>
    %87 = arith.addf %84, %86 : vector<4x256xf32>
    %cst_44 = arith.constant 0.000000e+00 : f32
    %88 = vector.broadcast %cst_44 : f32 to vector<4x256xf32>
    %89 = arith.maximumf %87, %88 : vector<4x256xf32>
    %90 = arith.negf %89 : vector<4x256xf32>
    %91 = math.exp %90 : vector<4x256xf32>
    %cst_45 = arith.constant 1.000000e+00 : f32
    %92 = vector.broadcast %cst_45 : f32 to vector<4x256xf32>
    %93 = arith.addf %92, %91 : vector<4x256xf32>
    %94 = arith.divf %92, %93 : vector<4x256xf32>
    %c0_46 = arith.constant 0 : index
    %c0_47 = arith.constant 0 : index
    %c0_48 = arith.constant 0 : index
    %95 = vector.load %arg15[%c0_46, %c0_47, %c0_48] : memref<1x4x256xf32, #tpu.memory_space<vmem>>, vector<1x4x256xf32>
    %96 = vector.shape_cast %95 : vector<1x4x256xf32> to vector<4x256xf32>
    %97 = vector.shape_cast %94 : vector<4x256xf32> to vector<1x4x256xf32>
    tpu.vector_store %arg15[%c0_46, %c0_47, %c0_48], %97 {strides = array<i32>} : memref<1x4x256xf32, #tpu.memory_space<vmem>>, vector<1x4x256xf32>,
    return
  }
  func.func @transform_0(%arg0: i32, %arg1: i32) -> (i32, i32, i32) {
    %c0_i32 = arith.constant 0 : i32
    %c0_i32_0 = arith.constant 0 : i32
    %c0_i32_1 = arith.constant 0 : i32
    return %arg0, %c0_i32, %c0_i32_0 : i32, i32, i32
  }
  func.func @transform_1(%arg0: i32, %arg1: i32) -> (i32, i32) {
    %c0_i32 = arith.constant 0 : i32
    %c0_i32_0 = arith.constant 0 : i32
    %c0_i32_1 = arith.constant 0 : i32
    return %c0_i32, %c0_i32_0 : i32, i32
  }
  func.func @transform_2(%arg0: i32, %arg1: i32) -> (i32, i32) {
    %c0_i32 = arith.constant 0 : i32
    %c0_i32_0 = arith.constant 0 : i32
    %c0_i32_1 = arith.constant 0 : i32
    return %c0_i32, %c0_i32_0 : i32, i32
  }
  func.func @transform_3(%arg0: i32, %arg1: i32) -> (i32, i32) {
    %c0_i32 = arith.constant 0 : i32
    %c0_i32_0 = arith.constant 0 : i32
    %c0_i32_1 = arith.constant 0 : i32
    return %c0_i32, %c0_i32_0 : i32, i32
  }
  func.func @transform_4(%arg0: i32, %arg1: i32) -> (i32, i32) {
    %c0_i32 = arith.constant 0 : i32
    %c0_i32_0 = arith.constant 0 : i32
    %c0_i32_1 = arith.constant 0 : i32
    return %c0_i32, %c0_i32_0 : i32, i32
  }
  func.func @transform_5(%arg0: i32, %arg1: i32) -> (i32, i32) {
    %c0_i32 = arith.constant 0 : i32
    %c0_i32_0 = arith.constant 0 : i32
    %c0_i32_1 = arith.constant 0 : i32
    return %c0_i32, %c0_i32_0 : i32, i32
  }
  func.func @transform_6(%arg0: i32, %arg1: i32) -> (i32, i32) {
    %c0_i32 = arith.constant 0 : i32
    %c0_i32_0 = arith.constant 0 : i32
    %c0_i32_1 = arith.constant 0 : i32
    return %c0_i32, %c0_i32_0 : i32, i32
  }
  func.func @transform_7(%arg0: i32, %arg1: i32) -> (i32, i32) {
    %c0_i32 = arith.constant 0 : i32
    %c0_i32_0 = arith.constant 0 : i32
    %c0_i32_1 = arith.constant 0 : i32
    return %c0_i32, %c0_i32_0 : i32, i32
  }
  func.func @transform_8(%arg0: i32, %arg1: i32) -> (i32, i32) {
    %c0_i32 = arith.constant 0 : i32
    %c0_i32_0 = arith.constant 0 : i32
    %c0_i32_1 = arith.constant 0 : i32
    return %c0_i32, %c0_i32_0 : i32, i32
  }
  func.func @transform_9(%arg0: i32, %arg1: i32) -> (i32, i32) {
    %c0_i32 = arith.constant 0 : i32
    %c0_i32_0 = arith.constant 0 : i32
    %c0_i32_1 = arith.constant 0 : i32
    return %c0_i32, %c0_i32_0 : i32, i32
  }
  func.func @transform_10(%arg0: i32, %arg1: i32) -> (i32, i32) {
    %c0_i32 = arith.constant 0 : i32
    %c0_i32_0 = arith.constant 0 : i32
    %c0_i32_1 = arith.constant 0 : i32
    return %c0_i32, %c0_i32_0 : i32, i32
  }
  func.func @transform_11(%arg0: i32, %arg1: i32) -> (i32, i32) {
    %c0_i32 = arith.constant 0 : i32
    %c0_i32_0 = arith.constant 0 : i32
    %c0_i32_1 = arith.constant 0 : i32
    return %c0_i32, %c0_i32_0 : i32, i32
  }
  func.func @transform_12(%arg0: i32, %arg1: i32) -> (i32, i32) {
    %c0_i32 = arith.constant 0 : i32
    %c0_i32_0 = arith.constant 0 : i32
    %c0_i32_1 = arith.constant 0 : i32
    return %c0_i32, %c0_i32_0 : i32, i32
  }
  func.func @transform_13(%arg0: i32, %arg1: i32) -> (i32, i32, i32) {
    %c0_i32 = arith.constant 0 : i32
    %c0_i32_0 = arith.constant 0 : i32
    return %arg0, %c0_i32, %arg1 : i32, i32, i32
  }
}

</mosaic_0001>

<llo_original>
// kernel: tpu_custom_call.1
$region0: #{tpu_custom_call.1}
  #allocation0 [shape = 'u32[]', space=smem, size = 0x4, offset = 0x4, fixed_abs, tag = 'smem constant byte address 0x4 - core index']
  #allocation1 [shape = 'u32[144,128]{1,0:T(1,128)}', space=vmem, size = 0x12000, scoped, tag = 'internal scratch']
  %s0 = inlined_call_operand.vmem [shape: f32[2,30,1], index: 0, kind: input, shape index: {}]
  %s1 = inlined_call_operand.vmem [shape: f32[30,1], index: 1, kind: input, shape index: {}]
  %s2 = inlined_call_operand.vmem [shape: f32[30,1], index: 2, kind: input, shape index: {}]
  %s3 = inlined_call_operand.vmem [shape: bf16[30,30], index: 3, kind: input, shape index: {}]
  %s4 = inlined_call_operand.vmem [shape: f32[30,1], index: 4, kind: input, shape index: {}]
  %s5 = inlined_call_operand.vmem [shape: bf16[8,30], index: 5, kind: input, shape index: {}]
  %s6 = inlined_call_operand.vmem [shape: f32[8,1], index: 6, kind: input, shape index: {}]
  %s7 = inlined_call_operand.vmem [shape: bf16[48,8], index: 7, kind: input, shape index: {}]
  %s8 = inlined_call_operand.vmem [shape: f32[48,1], index: 8, kind: input, shape index: {}]
  %s9 = inlined_call_operand.vmem [shape: bf16[48,48], index: 9, kind: input, shape index: {}]
  %s10 = inlined_call_operand.vmem [shape: f32[48,1], index: 10, kind: input, shape index: {}]
  %s11 = inlined_call_operand.vmem [shape: bf16[4,48], index: 11, kind: input, shape index: {}]
  %s12 = inlined_call_operand.vmem [shape: f32[4,1], index: 12, kind: input, shape index: {}]
  %s13 = inlined_call_operand.hbm [shape: f32[2,4,256], index: 13, kind: output, shape index: {}]
  %s14 = sld [smem:[#allocation0]]
  $region85: #{tpu_custom_call.1} parent=0
    _
  %s16 = ssub.s32 1, %s14
  %s17 = scalar_select 0, %s16, %s14
  $region1: #{tpu_custom_call.1} parent=0
    #allocation2 [shape = 'u8[8192]{0}', space=vmem, size = 0x2000, scoped, tag = 'output window, operand 0']
    #allocation3 [shape = 's32[2]{0}', space=sflag, size = 0x8, scoped, tag = 'scoped memory for tpu_custom_call.1']
    %18 = vsyncpa [#allocation3], 0
    %s19 = scalar_lea.sflag [#allocation3], 1
    %20 = vsyncpa %s19, 0
    loop: start=0, step=1, limit=4
    $region2: #{tpu_custom_call.1} parent=1 // loop_pre_header
      _
    $region3: #{tpu_custom_call.1} parent=1 // loop_header
      %s22 = sphi 0, %s26
      %p23 = scmp.ge.s32.totalorder %s22, 4
      %s29 = sphi 0, %s41
      %s30 = sphi 0, %s37
      %s31 = sphi 0, %s29
      %s32 = sphi 0, %s30
      %s33 = sphi 0, %s31
      %s34 = sphi 0, %s32
      %s44 = sphi 0, %s46
      %s47 = sphi 0, %s44
      %s48 = sphi 0, %s47
      %s64 = sphi 0, %s48
      %s68 = sphi 0, %s68
      %s70 = sphi 0, %s68
      %s71 = sphi 0, %s70
      %s85 = sphi 0, %s71
      %s89 = sphi 0, %s89
      %s91 = sphi 0, %s89
      %s92 = sphi 0, %s91
      %s106 = sphi 0, %s92
      %s110 = sphi 0, %s110
      %s112 = sphi 0, %s110
      %s113 = sphi 0, %s112
      %s127 = sphi 0, %s113
      %s131 = sphi 0, %s131
      %s133 = sphi 0, %s131
      %s134 = sphi 0, %s133
      %s148 = sphi 0, %s134
      %s152 = sphi 0, %s152
      %s154 = sphi 0, %s152
      %s155 = sphi 0, %s154
      %s169 = sphi 0, %s155
      %s173 = sphi 0, %s173
      %s175 = sphi 0, %s173
      %s176 = sphi 0, %s175
      %s190 = sphi 0, %s176
      %s194 = sphi 0, %s194
      %s196 = sphi 0, %s194
      %s197 = sphi 0, %s196
      %s211 = sphi 0, %s197
      %s215 = sphi 0, %s215
      %s217 = sphi 0, %s215
      %s218 = sphi 0, %s217
      %s232 = sphi 0, %s218
      %s236 = sphi 0, %s236
      %s238 = sphi 0, %s236
      %s239 = sphi 0, %s238
      %s253 = sphi 0, %s239
      %s257 = sphi 0, %s257
      %s259 = sphi 0, %s257
      %s260 = sphi 0, %s259
      %s274 = sphi 0, %s260
      %s278 = sphi 0, %s278
      %s280 = sphi 0, %s278
      %s281 = sphi 0, %s280
      %s295 = sphi 0, %s281
      %s299 = sphi 0, %s299
      %s301 = sphi 0, %s299
      %s302 = sphi 0, %s301
      %s316 = sphi 0, %s302
      %s324 = sphi 0, %s326
      %s327 = sphi 0, %s324
      %s328 = sphi 0, %s327
      %s344 = sphi 0, %s328
    $region4: #{tpu_custom_call.1} parent=1 // loop_header_branch
      %25 = sbr.rel (%p23) target = $region8
    $region5: #{tpu_custom_call.1} parent=1 // loop_body
      %s27 = ssub.s32 %s22, 1
      %s28 = ssub.s32 %s22, 2
      %s35 = sadd.s32 1, %s30
      %p36 = scmp.ge.s32.totalorder %s35, 1
      %s37 = scalar_select %p36, 0, %s35
      %s38 = sadd.s32 1, %s29
      %s39 = scalar_select %p36, %s38, %s29
      %p40 = scmp.ge.s32.totalorder %s39, 2
      %s41 = scalar_select %p40, 0, %s39
      %s42 = ssub.s32 %s29, %s41
      %p43 = scmp.eq.s32.totalorder %s42, 0
      %s45 = sadd.s32 %s44, 1
      %s46 = scalar_select %p43, %s44, %s45
      %p49 = pneg %p43
      %p50 = scmp.eq.s32.totalorder %s22, 1
      %p51 = por %p49, %p50
      %p52 = scmp.ne.s32.totalorder %s44, %s47
      %p53 = scmp.eq.s32.totalorder %s22, 0
      %p54 = por %p52, %p53
      %p55 = scmp.ne.s32.totalorder %s44, %s47
      %p56 = scmp.eq.s32.totalorder %s27, 1
      %p57 = por %p55, %p56
      %p58 = scmp.ne.s32.totalorder %s47, %s48
      %p59 = scmp.eq.s32.totalorder %s27, 0
      %p60 = por %p58, %p59
      %p61 = scmp.ne.s32.totalorder %s47, %s48
      %p62 = scmp.eq.s32.totalorder %s28, 1
      %p63 = por %p61, %p62
      %p65 = scmp.ne.s32.totalorder %s48, %s64
      %p66 = scmp.eq.s32.totalorder %s28, 0
      %p67 = por %p65, %p66
      %s69 = sadd.s32 %s68, 1
      %p72 = scmp.eq.s32.totalorder %s22, 1
      %p73 = scmp.ne.s32.totalorder %s68, %s70
      %p74 = scmp.eq.s32.totalorder %s22, 0
      %p75 = por %p73, %p74
      %p76 = scmp.ne.s32.totalorder %s68, %s70
      %p77 = scmp.eq.s32.totalorder %s27, 1
      %p78 = por %p76, %p77
      %p79 = scmp.ne.s32.totalorder %s70, %s71
      %p80 = scmp.eq.s32.totalorder %s27, 0
      %p81 = por %p79, %p80
      %p82 = scmp.ne.s32.totalorder %s70, %s71
      %p83 = scmp.eq.s32.totalorder %s28, 1
      %p84 = por %p82, %p83
      %p86 = scmp.ne.s32.totalorder %s71, %s85
      %p87 = scmp.eq.s32.totalorder %s28, 0
      %p88 = por %p86, %p87
      %s90 = sadd.s32 %s89, 1
      %p93 = scmp.eq.s32.totalorder %s22, 1
      %p94 = scmp.ne.s32.totalorder %s89, %s91
      %p95 = scmp.eq.s32.totalorder %s22, 0
      %p96 = por %p94, %p95
      %p97 = scmp.ne.s32.totalorder %s89, %s91
      %p98 = scmp.eq.s32.totalorder %s27, 1
      %p99 = por %p97, %p98
      %p100 = scmp.ne.s32.totalorder %s91, %s92
      %p101 = scmp.eq.s32.totalorder %s27, 0
      %p102 = por %p100, %p101
      %p103 = scmp.ne.s32.totalorder %s91, %s92
      %p104 = scmp.eq.s32.totalorder %s28, 1
      %p105 = por %p103, %p104
      %p107 = scmp.ne.s32.totalorder %s92, %s106
      %p108 = scmp.eq.s32.totalorder %s28, 0
      %p109 = por %p107, %p108
      %s111 = sadd.s32 %s110, 1
      %p114 = scmp.eq.s32.totalorder %s22, 1
      %p115 = scmp.ne.s32.totalorder %s110, %s112
      %p116 = scmp.eq.s32.totalorder %s22, 0
      %p117 = por %p115, %p116
      %p118 = scmp.ne.s32.totalorder %s110, %s112
      %p119 = scmp.eq.s32.totalorder %s27, 1
      %p120 = por %p118, %p119
      %p121 = scmp.ne.s32.totalorder %s112, %s113
      %p122 = scmp.eq.s32.totalorder %s27, 0
      %p123 = por %p121, %p122
      %p124 = scmp.ne.s32.totalorder %s112, %s113
      %p125 = scmp.eq.s32.totalorder %s28, 1
      %p126 = por %p124, %p125
      %p128 = scmp.ne.s32.totalorder %s113, %s127
      %p129 = scmp.eq.s32.totalorder %s28, 0
      %p130 = por %p128, %p129
      %s132 = sadd.s32 %s131, 1
      %p135 = scmp.eq.s32.totalorder %s22, 1
      %p136 = scmp.ne.s32.totalorder %s131, %s133
      %p137 = scmp.eq.s32.totalorder %s22, 0
      %p138 = por %p136, %p137
      %p139 = scmp.ne.s32.totalorder %s131, %s133
      %p140 = scmp.eq.s32.totalorder %s27, 1
      %p141 = por %p139, %p140
      %p142 = scmp.ne.s32.totalorder %s133, %s134
      %p143 = scmp.eq.s32.totalorder %s27, 0
      %p144 = por %p142, %p143
      %p145 = scmp.ne.s32.totalorder %s133, %s134
      %p146 = scmp.eq.s32.totalorder %s28, 1
      %p147 = por %p145, %p146
      %p149 = scmp.ne.s32.totalorder %s134, %s148
      %p150 = scmp.eq.s32.totalorder %s28, 0
      %p151 = por %p149, %p150
      %s153 = sadd.s32 %s152, 1
      %p156 = scmp.eq.s32.totalorder %s22, 1
      %p157 = scmp.ne.s32.totalorder %s152, %s154
      %p158 = scmp.eq.s32.totalorder %s22, 0
      %p159 = por %p157, %p158
      %p160 = scmp.ne.s32.totalorder %s152, %s154
      %p161 = scmp.eq.s32.totalorder %s27, 1
      %p162 = por %p160, %p161
      %p163 = scmp.ne.s32.totalorder %s154, %s155
      %p164 = scmp.eq.s32.totalorder %s27, 0
      %p165 = por %p163, %p164
      %p166 = scmp.ne.s32.totalorder %s154, %s155
      %p167 = scmp.eq.s32.totalorder %s28, 1
      %p168 = por %p166, %p167
      %p170 = scmp.ne.s32.totalorder %s155, %s169
      %p171 = scmp.eq.s32.totalorder %s28, 0
      %p172 = por %p170, %p171
      %s174 = sadd.s32 %s173, 1
      %p177 = scmp.eq.s32.totalorder %s22, 1
      %p178 = scmp.ne.s32.totalorder %s173, %s175
      %p179 = scmp.eq.s32.totalorder %s22, 0
      %p180 = por %p178, %p179
      %p181 = scmp.ne.s32.totalorder %s173, %s175
      %p182 = scmp.eq.s32.totalorder %s27, 1
      %p183 = por %p181, %p182
      %p184 = scmp.ne.s32.totalorder %s175, %s176
      %p185 = scmp.eq.s32.totalorder %s27, 0
      %p186 = por %p184, %p185
      %p187 = scmp.ne.s32.totalorder %s175, %s176
      %p188 = scmp.eq.s32.totalorder %s28, 1
      %p189 = por %p187, %p188
      %p191 = scmp.ne.s32.totalorder %s176, %s190
      %p192 = scmp.eq.s32.totalorder %s28, 0
      %p193 = por %p191, %p192
      %s195 = sadd.s32 %s194, 1
      %p198 = scmp.eq.s32.totalorder %s22, 1
      %p199 = scmp.ne.s32.totalorder %s194, %s196
      %p200 = scmp.eq.s32.totalorder %s22, 0
      %p201 = por %p199, %p200
      %p202 = scmp.ne.s32.totalorder %s194, %s196
      %p203 = scmp.eq.s32.totalorder %s27, 1
      %p204 = por %p202, %p203
      %p205 = scmp.ne.s32.totalorder %s196, %s197
      %p206 = scmp.eq.s32.totalorder %s27, 0
      %p207 = por %p205, %p206
      %p208 = scmp.ne.s32.totalorder %s196, %s197
      %p209 = scmp.eq.s32.totalorder %s28, 1
      %p210 = por %p208, %p209
      %p212 = scmp.ne.s32.totalorder %s197, %s211
      %p213 = scmp.eq.s32.totalorder %s28, 0
      %p214 = por %p212, %p213
      %s216 = sadd.s32 %s215, 1
      %p219 = scmp.eq.s32.totalorder %s22, 1
      %p220 = scmp.ne.s32.totalorder %s215, %s217
      %p221 = scmp.eq.s32.totalorder %s22, 0
      %p222 = por %p220, %p221
      %p223 = scmp.ne.s32.totalorder %s215, %s217
      %p224 = scmp.eq.s32.totalorder %s27, 1
      %p225 = por %p223, %p224
      %p226 = scmp.ne.s32.totalorder %s217, %s218
      %p227 = scmp.eq.s32.totalorder %s27, 0
      %p228 = por %p226, %p227
      %p229 = scmp.ne.s32.totalorder %s217, %s218
      %p230 = scmp.eq.s32.totalorder %s28, 1
      %p231 = por %p229, %p230
      %p233 = scmp.ne.s32.totalorder %s218, %s232
      %p234 = scmp.eq.s32.totalorder %s28, 0
      %p235 = por %p233, %p234
      %s237 = sadd.s32 %s236, 1
      %p240 = scmp.eq.s32.totalorder %s22, 1
      %p241 = scmp.ne.s32.totalorder %s236, %s238
      %p242 = scmp.eq.s32.totalorder %s22, 0
      %p243 = por %p241, %p242
      %p244 = scmp.ne.s32.totalorder %s236, %s238
      %p245 = scmp.eq.s32.totalorder %s27, 1
      %p246 = por %p244, %p245
      %p247 = scmp.ne.s32.totalorder %s238, %s239
      %p248 = scmp.eq.s32.totalorder %s27, 0
      %p249 = por %p247, %p248
      %p250 = scmp.ne.s32.totalorder %s238, %s239
      %p251 = scmp.eq.s32.totalorder %s28, 1
      %p252 = por %p250, %p251
      %p254 = scmp.ne.s32.totalorder %s239, %s253
      %p255 = scmp.eq.s32.totalorder %s28, 0
      %p256 = por %p254, %p255
      %s258 = sadd.s32 %s257, 1
      %p261 = scmp.eq.s32.totalorder %s22, 1
      %p262 = scmp.ne.s32.totalorder %s257, %s259
      %p263 = scmp.eq.s32.totalorder %s22, 0
      %p264 = por %p262, %p263
      %p265 = scmp.ne.s32.totalorder %s257, %s259
      %p266 = scmp.eq.s32.totalorder %s27, 1
      %p267 = por %p265, %p266
      %p268 = scmp.ne.s32.totalorder %s259, %s260
      %p269 = scmp.eq.s32.totalorder %s27, 0
      %p270 = por %p268, %p269
      %p271 = scmp.ne.s32.totalorder %s259, %s260
      %p272 = scmp.eq.s32.totalorder %s28, 1
      %p273 = por %p271, %p272
      %p275 = scmp.ne.s32.totalorder %s260, %s274
      %p276 = scmp.eq.s32.totalorder %s28, 0
      %p277 = por %p275, %p276
      %s279 = sadd.s32 %s278, 1
      %p282 = scmp.eq.s32.totalorder %s22, 1
      %p283 = scmp.ne.s32.totalorder %s278, %s280
      %p284 = scmp.eq.s32.totalorder %s22, 0
      %p285 = por %p283, %p284
      %p286 = scmp.ne.s32.totalorder %s278, %s280
      %p287 = scmp.eq.s32.totalorder %s27, 1
      %p288 = por %p286, %p287
      %p289 = scmp.ne.s32.totalorder %s280, %s281
      %p290 = scmp.eq.s32.totalorder %s27, 0
      %p291 = por %p289, %p290
      %p292 = scmp.ne.s32.totalorder %s280, %s281
      %p293 = scmp.eq.s32.totalorder %s28, 1
      %p294 = por %p292, %p293
      %p296 = scmp.ne.s32.totalorder %s281, %s295
      %p297 = scmp.eq.s32.totalorder %s28, 0
      %p298 = por %p296, %p297
      %s300 = sadd.s32 %s299, 1
      %p303 = scmp.eq.s32.totalorder %s22, 1
      %p304 = scmp.ne.s32.totalorder %s299, %s301
      %p305 = scmp.eq.s32.totalorder %s22, 0
      %p306 = por %p304, %p305
      %p307 = scmp.ne.s32.totalorder %s299, %s301
      %p308 = scmp.eq.s32.totalorder %s27, 1
      %p309 = por %p307, %p308
      %p310 = scmp.ne.s32.totalorder %s301, %s302
      %p311 = scmp.eq.s32.totalorder %s27, 0
      %p312 = por %p310, %p311
      %p313 = scmp.ne.s32.totalorder %s301, %s302
      %p314 = scmp.eq.s32.totalorder %s28, 1
      %p315 = por %p313, %p314
      %p317 = scmp.ne.s32.totalorder %s302, %s316
      %p318 = scmp.eq.s32.totalorder %s28, 0
      %p319 = por %p317, %p318
      %s320 = ssub.s32 %s29, %s41
      %s321 = ssub.s32 %s30, %s37
      %s322 = sor.u32 %s320, %s321
      %p323 = scmp.eq.s32.totalorder %s322, 0
      %s325 = sadd.s32 %s324, 1
      %s326 = scalar_select %p323, %s324, %s325
      %p329 = pneg %p323
      %p330 = scmp.eq.s32.totalorder %s22, 1
      %p331 = por %p329, %p330
      %p332 = scmp.ne.s32.totalorder %s324, %s327
      %p333 = scmp.eq.s32.totalorder %s22, 0
      %p334 = por %p332, %p333
      %p335 = scmp.ne.s32.totalorder %s324, %s327
      %p336 = scmp.eq.s32.totalorder %s27, 1
      %p337 = por %p335, %p336
      %p338 = scmp.ne.s32.totalorder %s327, %s328
      %p339 = scmp.eq.s32.totalorder %s27, 0
      %p340 = por %p338, %p339
      %p341 = scmp.ne.s32.totalorder %s327, %s328
      %p342 = scmp.eq.s32.totalorder %s28, 1
      %p343 = por %p341, %p342
      %p345 = scmp.ne.s32.totalorder %s328, %s344
      %p346 = scmp.eq.s32.totalorder %s28, 0
      %p347 = por %p345, %p346
      %p348 = scmp.le.s32.totalorder 1, %s22
      %p349 = scmp.lt.s32.totalorder %s22, 3
      %p350 = pnand %p348, %p349
      %p351 = pneg %p350
      // Predicated region
      $region9: #{tpu_custom_call.1} parent=5 // pred_check
        _
      $region10: #{tpu_custom_call.1} parent=5 // pred_check_branch
        %353 = sbr.rel (%p350) target = $region12
      $region11: #{tpu_custom_call.1} parent=5 // pred_region
        %s354 = ssub.s32 %s22, 1
        // Predicated region
        $region13: #{tpu_custom_call.1} parent=11 // pred_check
          %p355 = pneg %p81
        $region14: #{tpu_custom_call.1} parent=11 // pred_check_branch
          %357 = sbr.rel (%p355) target = $region16
        $region15: #{tpu_custom_call.1} parent=11 // pred_region
          _
        $region16: #{tpu_custom_call.1} parent=11 // pred_fallthru
          _
        // Predicated region
        $region17: #{tpu_custom_call.1} parent=11 // pred_check
          %p358 = pneg %p102
        $region18: #{tpu_custom_call.1} parent=11 // pred_check_branch
          %360 = sbr.rel (%p358) target = $region20
        $region19: #{tpu_custom_call.1} parent=11 // pred_region
          _
        $region20: #{tpu_custom_call.1} parent=11 // pred_fallthru
          _
        // Predicated region
        $region21: #{tpu_custom_call.1} parent=11 // pred_check
          %p361 = pneg %p123
        $region22: #{tpu_custom_call.1} parent=11 // pred_check_branch
          %363 = sbr.rel (%p361) target = $region24
        $region23: #{tpu_custom_call.1} parent=11 // pred_region
          _
        $region24: #{tpu_custom_call.1} parent=11 // pred_fallthru
          _
        // Predicated region
        $region25: #{tpu_custom_call.1} parent=11 // pred_check
          %p364 = pneg %p144
        $region26: #{tpu_custom_call.1} parent=11 // pred_check_branch
          %366 = sbr.rel (%p364) target = $region28
        $region27: #{tpu_custom_call.1} parent=11 // pred_region
          _
        $region28: #{tpu_custom_call.1} parent=11 // pred_fallthru
          _
        // Predicated region
        $region29: #{tpu_custom_call.1} parent=11 // pred_check
          %p367 = pneg %p165
        $region30: #{tpu_custom_call.1} parent=11 // pred_check_branch
          %369 = sbr.rel (%p367) target = $region32
        $region31: #{tpu_custom_call.1} parent=11 // pred_region
          _
        $region32: #{tpu_custom_call.1} parent=11 // pred_fallthru
          _
        // Predicated region
        $region33: #{tpu_custom_call.1} parent=11 // pred_check
          %p370 = pneg %p186
        $region34: #{tpu_custom_call.1} parent=11 // pred_check_branch
          %372 = sbr.rel (%p370) target = $region36
        $region35: #{tpu_custom_call.1} parent=11 // pred_region
          _
        $region36: #{tpu_custom_call.1} parent=11 // pred_fallthru
          _
        // Predicated region
        $region37: #{tpu_custom_call.1} parent=11 // pred_check
          %p373 = pneg %p207
        $region38: #{tpu_custom_call.1} parent=11 // pred_check_branch
          %375 = sbr.rel (%p373) target = $region40
        $region39: #{tpu_custom_call.1} parent=11 // pred_region
          _
        $region40: #{tpu_custom_call.1} parent=11 // pred_fallthru
          _
        // Predicated region
        $region41: #{tpu_custom_call.1} parent=11 // pred_check
          %p376 = pneg %p228
        $region42: #{tpu_custom_call.1} parent=11 // pred_check_branch
          %378 = sbr.rel (%p376) target = $region44
        $region43: #{tpu_custom_call.1} parent=11 // pred_region
          _
        $region44: #{tpu_custom_call.1} parent=11 // pred_fallthru
          _
        // Predicated region
        $region45: #{tpu_custom_call.1} parent=11 // pred_check
          %p379 = pneg %p249
        $region46: #{tpu_custom_call.1} parent=11 // pred_check_branch
          %381 = sbr.rel (%p379) target = $region48
        $region47: #{tpu_custom_call.1} parent=11 // pred_region
          _
        $region48: #{tpu_custom_call.1} parent=11 // pred_fallthru
          _
        // Predicated region
        $region49: #{tpu_custom_call.1} parent=11 // pred_check
          %p382 = pneg %p270
        $region50: #{tpu_custom_call.1} parent=11 // pred_check_branch
          %384 = sbr.rel (%p382) target = $region52
        $region51: #{tpu_custom_call.1} parent=11 // pred_region
          _
        $region52: #{tpu_custom_call.1} parent=11 // pred_fallthru
          _
        // Predicated region
        $region53: #{tpu_custom_call.1} parent=11 // pred_check
          %p385 = pneg %p291
        $region54: #{tpu_custom_call.1} parent=11 // pred_check_branch
          %387 = sbr.rel (%p385) target = $region56
        $region55: #{tpu_custom_call.1} parent=11 // pred_region
          _
        $region56: #{tpu_custom_call.1} parent=11 // pred_fallthru
          _
        // Predicated region
        $region57: #{tpu_custom_call.1} parent=11 // pred_check
          %p388 = pneg %p312
        $region58: #{tpu_custom_call.1} parent=11 // pred_check_branch
          %390 = sbr.rel (%p388) target = $region60
        $region59: #{tpu_custom_call.1} parent=11 // pred_region
          _
        $region60: #{tpu_custom_call.1} parent=11 // pred_fallthru
          _
      $region12: #{tpu_custom_call.1} parent=5 // pred_fallthru
        _
      %p391 = scmp.lt.s32.totalorder %s22, 2
      // Predicated region
      $region61: #{tpu_custom_call.1} parent=5 // pred_check
        %p392 = pneg %p391
      $region62: #{tpu_custom_call.1} parent=5 // pred_check_branch
        %394 = sbr.rel (%p392) target = $region64
      $region63: #{tpu_custom_call.1} parent=5 // pred_region
        // Predicated region
        $region65: #{tpu_custom_call.1} parent=63 // pred_check
          %p395 = pneg %p54
        $region66: #{tpu_custom_call.1} parent=63 // pred_check_branch
          %397 = sbr.rel (%p395) target = $region68
        $region67: #{tpu_custom_call.1} parent=63 // pred_region
          %p398 = scmp.lt.s32.totalorder %s29, 1
          %s399 = scalar_select %p398, %s29, 1
          %s400 = smul.addr %s399, 4
          %s401 = smul.addr %s400, 8
          %s402 = scalar_lea.vmem %s0, %s401
        $region68: #{tpu_custom_call.1} parent=63 // pred_fallthru
          _
      $region64: #{tpu_custom_call.1} parent=5 // pred_fallthru
        _
      %p403 = scmp.le.s32.totalorder 1, %s22
      %p404 = scmp.lt.s32.totalorder %s22, 3
      %p405 = pnand %p403, %p404
      %p406 = pneg %p405
      // Predicated region
      $region69: #{tpu_custom_call.1} parent=5 // pred_check
        _
      $region70: #{tpu_custom_call.1} parent=5 // pred_check_branch
        %408 = sbr.rel (%p405) target = $region72
      $region71: #{tpu_custom_call.1} parent=5 // pred_region
        %s409 = ssub.s32 %s22, 1
        %p410 = scmp.lt.s32.totalorder %s31, 1
        %s411 = scalar_select %p410, %s31, 1
        %s412 = smul.addr %s411, 4
        %s413 = smul.addr %s412, 8
        %s414 = scalar_lea.vmem %s0, %s413
        %p415 = pneg %p60
        %p416 = pneg %p57
        %p417 = pneg %p81
        %p418 = pneg %p78
        %p419 = pneg %p102
        %p420 = pneg %p99
        %p421 = pneg %p123
        %p422 = pneg %p120
        %p423 = pneg %p144
        %p424 = pneg %p141
        %p425 = pneg %p165
        %p426 = pneg %p162
        %p427 = pneg %p186
        %p428 = pneg %p183
        %p429 = pneg %p207
        %p430 = pneg %p204
        %p431 = pneg %p228
        %p432 = pneg %p225
        %p433 = pneg %p249
        %p434 = pneg %p246
        %p435 = pneg %p270
        %p436 = pneg %p267
        %p437 = pneg %p291
        %p438 = pneg %p288
        %p439 = pneg %p312
        %p440 = pneg %p309
        %p441 = pneg %p340
        %p442 = pneg %p337
        %s443 = sand.u32 %s327, 1
        %s444 = scalar_lea.sflag [#allocation3], %s443
        %s445 = sand.u32 %s327, 1
        %s446 = smul.addr %s445, 8
        %s447 = scalar_lea.vmem [#allocation2], %s446
        %p448 = scmp.lt.s32.totalorder %s31, 1
        %s449 = scalar_select %p448, %s31, 1
        %s450 = smul.addr %s449, 4
        %s451 = smul.addr %s450, 8
        %s452 = scalar_lea.vmem %s0, %s451
        %s453 = smul.u32 2, %s32
        %s455 = smul.u32 %s32, 256
        %v456 = vlaneseq
        %v457 = vand.u32 %v456, 127
        %v458 = vadd.s32 %v457, 128
        %v459 = vstv %s455
        %v460 = vadd.s32 %v457, %v459
        %v461 = vadd.s32 %v458, %v459
        %v462 = vcvt.s32.f32 %v460
        %v463 = vcvt.s32.f32 %v461
        %v464 = vmul.f32 %v462, 0.0625
        %v465 = vmul.f32 %v463, 0.0625
        %v466 = vcvt.f32.s32.to.zero.pseudo %v464
        %v467 = vcvt.f32.s32.to.zero.pseudo %v465
        %v468 = vmul.u32 %v466, 16
        %v469 = vmul.u32 %v467, 16
        %vm470 = vcmp.gt.s32.totalorder %v468, %v460
        %vm471 = vcmp.gt.s32.totalorder %v469, %v461
        %v472 = vsub.s32 %v466, 1
        %v473 = vsub.s32 %v467, 1
        %v474 = vsel %vm470, %v472, %v466
        %v475 = vsel %vm471, %v473, %v467
        %v476 = vadd.s32 %v474, 1
        %v477 = vadd.s32 %v475, 1
        %v478 = vmul.u32 %v476, 16
        %v479 = vmul.u32 %v477, 16
        %vm480 = vcmp.le.s32.totalorder %v478, %v460
        %vm481 = vcmp.le.s32.totalorder %v479, %v461
        %v482 = vsel %vm480, %v476, %v474
        %v483 = vsel %vm481, %v477, %v475
        %v484 = vmul.u32 %v482, 16
        %v485 = vmul.u32 %v483, 16
        %v486 = vsub.s32 %v460, %v484
        %v487 = vsub.s32 %v461, %v485
        %v488 = vcvt.s32.f32 %v486
        %v489 = vcvt.s32.f32 %v487
        %v490 = vmul.f32 %v488, 0.13333334
        %v491 = vmul.f32 %v489, 0.13333334
        %v492 = vsub.f32 %v490, 1.0
        %v493 = vsub.f32 %v491, 1.0
        %v494 = vcvt.s32.f32 %v482
        %v495 = vcvt.s32.f32 %v483
        %v496 = vmul.f32 %v494, 0.13333334
        %v497 = vmul.f32 %v495, 0.13333334
        %v498 = vsub.f32 %v496, 1.0
        %v499 = vsub.f32 %v497, 1.0
        %v500 = vld [vmem:[%s1] sm:$0xff]
        %v501 = vld [vmem:[%s1 + $0x8] sm:$0xff]
        %v502 = vld [vmem:[%s1 + $0x10] sm:$0xff]
        %v503 = vld [vmem:[%s1 + $0x18] sm:$0x3f]
        %505 = vset.pattern.permute.xlu0 0
        %506 = vperm.xlu0 %505, %v500
        %v507 = vpop.permute.xlu0 %506
        %510 = vset.pattern.permute.xlu0 0
        %511 = vperm.xlu0 %510, %v501
        %v512 = vpop.permute.xlu0 %511
        %515 = vset.pattern.permute.xlu0 0
        %516 = vperm.xlu0 %515, %v502
        %v517 = vpop.permute.xlu0 %516
        %520 = vset.pattern.permute.xlu0 0
        %521 = vperm.xlu0 %520, %v503
        %v522 = vpop.permute.xlu0 %521
        %v524 = vmul.f32 %v507, %v492
        %v525 = vmul.f32 %v507, %v493
        %v526 = vmul.f32 %v512, %v492
        %v527 = vmul.f32 %v512, %v493
        %v528 = vmul.f32 %v517, %v492
        %v529 = vmul.f32 %v517, %v493
        %v530 = vmul.f32 %v522, %v492
        %v531 = vmul.f32 %v522, %v493
        %v532 = vld [vmem:[%s2] sm:$0xff]
        %v533 = vld [vmem:[%s2 + $0x8] sm:$0xff]
        %v534 = vld [vmem:[%s2 + $0x10] sm:$0xff]
        %v535 = vld [vmem:[%s2 + $0x18] sm:$0x3f]
        %537 = vset.pattern.permute.xlu0 0
        %538 = vperm.xlu0 %537, %v532
        %v539 = vpop.permute.xlu0 %538
        %542 = vset.pattern.permute.xlu0 0
        %543 = vperm.xlu0 %542, %v533
        %v544 = vpop.permute.xlu0 %543
        %547 = vset.pattern.permute.xlu0 0
        %548 = vperm.xlu0 %547, %v534
        %v549 = vpop.permute.xlu0 %548
        %552 = vset.pattern.permute.xlu0 0
        %553 = vperm.xlu0 %552, %v535
        %v554 = vpop.permute.xlu0 %553
        %v556 = vmul.f32 %v539, %v498
        %v557 = vmul.f32 %v539, %v499
        %v558 = vmul.f32 %v544, %v498
        %v559 = vmul.f32 %v544, %v499
        %v560 = vmul.f32 %v549, %v498
        %v561 = vmul.f32 %v549, %v499
        %v562 = vmul.f32 %v554, %v498
        %v563 = vmul.f32 %v554, %v499
        %v564 = vadd.f32 %v524, %v556
        %v565 = vadd.f32 %v525, %v557
        %v566 = vadd.f32 %v526, %v558
        %v567 = vadd.f32 %v527, %v559
        %v568 = vadd.f32 %v528, %v560
        %v569 = vadd.f32 %v529, %v561
        %v570 = vadd.f32 %v530, %v562
        %v571 = vadd.f32 %v531, %v563
        %v572 = vld [vmem:[%s452] sm:$0xff]
        %v573 = vld [vmem:[%s452 + $0x8] sm:$0xff]
        %v574 = vld [vmem:[%s452 + $0x10] sm:$0xff]
        %v575 = vld [vmem:[%s452 + $0x18] sm:$0x3f]
        %577 = vset.pattern.permute.xlu0 0
        %578 = vperm.xlu0 %577, %v572
        %v579 = vpop.permute.xlu0 %578
        %582 = vset.pattern.permute.xlu0 0
        %583 = vperm.xlu0 %582, %v573
        %v584 = vpop.permute.xlu0 %583
        %587 = vset.pattern.permute.xlu0 0
        %588 = vperm.xlu0 %587, %v574
        %v589 = vpop.permute.xlu0 %588
        %592 = vset.pattern.permute.xlu0 0
        %593 = vperm.xlu0 %592, %v575
        %v594 = vpop.permute.xlu0 %593
        %v596 = vadd.f32 %v564, %v579
        %v597 = vadd.f32 %v565, %v579
        %v598 = vadd.f32 %v566, %v584
        %v599 = vadd.f32 %v567, %v584
        %v600 = vadd.f32 %v568, %v589
        %v601 = vadd.f32 %v569, %v589
        %v602 = vadd.f32 %v570, %v594
        %v603 = vadd.f32 %v571, %v594
        %v604 = vmax.f32 %v596, 0.0
        %v605 = vmax.f32 %v597, 0.0
        %v606 = vmax.f32 %v598, 0.0
        %v607 = vmax.f32 %v599, 0.0
        %v608 = vmax.f32 %v600, 0.0
        %v609 = vmax.f32 %v601, 0.0
        %v610 = vmax.f32 %v602, 0.0
        %v611 = vmax.f32 %v603, 0.0
        %v612 = vld [vmem:[%s3] sm:$0xf]
        %v613 = vld [vmem:[%s3 + $0x4] sm:$0xf]
        %v614 = vld [vmem:[%s3 + $0x8] sm:$0xf]
        %v615 = vld [vmem:[%s3 + $0xc] sm:$0x7]
        %v616 = vpack.c.bf16 %v606, %v604
        %v617 = vpack.c.bf16 %v607, %v605
        %v618 = vpack.c.bf16 %v610, %v608
        %v619 = vpack.c.bf16 %v611, %v609
        %v620 = vld [vmem:[%s4] sm:$0xff]
        %v621 = vld [vmem:[%s4 + $0x8] sm:$0xff]
        %v622 = vld [vmem:[%s4 + $0x10] sm:$0xff]
        %v623 = vld [vmem:[%s4 + $0x18] sm:$0x3f]
        %625 = vset.pattern.permute.xlu0 0
        %626 = vperm.xlu0 %625, %v620
        %v627 = vpop.permute.xlu0 %626
        %630 = vset.pattern.permute.xlu0 0
        %631 = vperm.xlu0 %630, %v621
        %v632 = vpop.permute.xlu0 %631
        %635 = vset.pattern.permute.xlu0 0
        %636 = vperm.xlu0 %635, %v622
        %v637 = vpop.permute.xlu0 %636
        %640 = vset.pattern.permute.xlu0 0
        %641 = vperm.xlu0 %640, %v623
        %v642 = vpop.permute.xlu0 %641
        %v648 = vunpack.c.l.b16 %v612
        %v649 = vunpack.c.l.b16 %v613
        %v650 = vunpack.c.l.b16 %v614
        %v651 = vunpack.c.l.b16 %v615
        %v652 = vpack.c.b16 %v649, %v648
        %v653 = vpack.c.b16 %v651, %v650
        %vm654 = vcmask 244736
        %v656 = vsel %vm654, %v652, 0
        %v659 = vsel %vm654, %v653, 0
        %vm661 = vcmask 1046528
        %v663 = vsel %vm661, %v618, 0
        %v666 = vsel %vm661, %v619, 0
        %668 = vmatprep.subr.bf16.mxu0 %v617
        %669 = vmatpush1.bf16.msra.mxu0 %v616
        %670 = vmatprep.subr.bf16.mxu0 %v666
        %671 = vmatpush1.bf16.msra.mxu0 %v663
        %672 = vmatprep.subr.bf16.mxu0 0
        %673 = vmatpush1.bf16.msra.mxu0 0
        %674 = vmatprep.subr.bf16.mxu0 0
        %675 = vmatpush1.bf16.msra.mxu0 0
        %676 = vmatprep.subr.bf16.mxu0 0
        %677 = vmatpush1.bf16.msra.mxu0 0
        %678 = vmatprep.subr.bf16.mxu0 0
        %679 = vmatpush1.bf16.msra.mxu0 0
        %680 = vmatprep.subr.bf16.mxu0 0
        %681 = vmatpush1.bf16.msra.mxu0 0
        %682 = vmatprep.subr.bf16.mxu0 0
        %683 = vmatpush1.bf16.msra.mxu0 0
        %684 = vmatprep.subr.bf16.mxu0 0
        %685 = vmatpush1.bf16.msra.mxu0 0
        %686 = vmatprep.subr.bf16.mxu0 0
        %687 = vmatpush1.bf16.msra.mxu0 0
        %688 = vmatprep.subr.bf16.mxu0 0
        %689 = vmatpush1.bf16.msra.mxu0 0
        %690 = vmatprep.subr.bf16.mxu0 0
        %691 = vmatpush1.bf16.msra.mxu0 0
        %692 = vmatprep.subr.bf16.mxu0 0
        %693 = vmatpush1.bf16.msra.mxu0 0
        %694 = vmatprep.subr.bf16.mxu0 0
        %695 = vmatpush1.bf16.msra.mxu0 0
        %696 = vmatprep.subr.bf16.mxu0 0
        %697 = vmatpush1.bf16.msra.mxu0 0
        %698 = vmatprep.subr.bf16.mxu0 0
        %699 = vmatpush1.bf16.msra.mxu0 0
        %700 = vmatprep.mubr.bf16.mxu0 0
        %701 = vmatmul.mubr.bf16.gmra.mrb[0].mxu0 %v656
        %v702 = vpop.f32.mrb[0].mxu0
        %v703 = vadd.f32 %v627, %v702
        %v704 = vpop.f32.mrb[0].mxu0
        %v705 = vadd.f32 %v627, %v704
        %v706 = vpop.f32.mrb[0].mxu0
        %v707 = vadd.f32 %v632, %v706
        %v708 = vpop.f32.mrb[0].mxu0
        %v709 = vadd.f32 %v632, %v708
        %710 = vmatprep.mubr.bf16.mxu0 0
        %711 = vmatmul.mubr.bf16.gmra.mrb[0].mxu0 %v659
        %v712 = vpop.f32.mrb[0].mxu0
        %v713 = vadd.f32 %v637, %v712
        %v714 = vpop.f32.mrb[0].mxu0
        %v715 = vadd.f32 %v637, %v714
        %v716 = vpop.f32.mrb[0].mxu0
        %v717 = vadd.f32 %v642, %v716
        %v718 = vpop.f32.mrb[0].mxu0
        %v719 = vadd.f32 %v642, %v718
        %720 = vdwg.mxu0
        %v721 = vmax.f32 %v703, 0.0
        %v722 = vmax.f32 %v705, 0.0
        %v723 = vmax.f32 %v707, 0.0
        %v724 = vmax.f32 %v709, 0.0
        %v725 = vmax.f32 %v713, 0.0
        %v726 = vmax.f32 %v715, 0.0
        %v727 = vmax.f32 %v717, 0.0
        %v728 = vmax.f32 %v719, 0.0
        %v729 = vld [vmem:[%s5] sm:$0xf]
        %v730 = vpack.c.bf16 %v723, %v721
        %v731 = vpack.c.bf16 %v724, %v722
        %v732 = vpack.c.bf16 %v727, %v725
        %v733 = vpack.c.bf16 %v728, %v726
        %v734 = vld [vmem:[%s6] sm:$0xff]
        %736 = vset.pattern.permute.xlu0 0
        %737 = vperm.xlu0 %736, %v734
        %v738 = vpop.permute.xlu0 %737
        %v741 = vsel %vm654, %v729, 0
        %v744 = vsel %vm661, %v732, 0
        %v747 = vsel %vm661, %v733, 0
        %749 = vmatprep.subr.bf16.mxu0 %v731
        %750 = vmatpush1.bf16.msra.mxu0 %v730
        %751 = vmatprep.subr.bf16.mxu0 %v747
        %752 = vmatpush1.bf16.msra.mxu0 %v744
        %753 = vmatprep.subr.bf16.mxu0 0
        %754 = vmatpush1.bf16.msra.mxu0 0
        %755 = vmatprep.subr.bf16.mxu0 0
        %756 = vmatpush1.bf16.msra.mxu0 0
        %757 = vmatprep.subr.bf16.mxu0 0
        %758 = vmatpush1.bf16.msra.mxu0 0
        %759 = vmatprep.subr.bf16.mxu0 0
        %760 = vmatpush1.bf16.msra.mxu0 0
        %761 = vmatprep.subr.bf16.mxu0 0
        %762 = vmatpush1.bf16.msra.mxu0 0
        %763 = vmatprep.subr.bf16.mxu0 0
        %764 = vmatpush1.bf16.msra.mxu0 0
        %765 = vmatprep.subr.bf16.mxu0 0
        %766 = vmatpush1.bf16.msra.mxu0 0
        %767 = vmatprep.subr.bf16.mxu0 0
        %768 = vmatpush1.bf16.msra.mxu0 0
        %769 = vmatprep.subr.bf16.mxu0 0
        %770 = vmatpush1.bf16.msra.mxu0 0
        %771 = vmatprep.subr.bf16.mxu0 0
        %772 = vmatpush1.bf16.msra.mxu0 0
        %773 = vmatprep.subr.bf16.mxu0 0
        %774 = vmatpush1.bf16.msra.mxu0 0
        %775 = vmatprep.subr.bf16.mxu0 0
        %776 = vmatpush1.bf16.msra.mxu0 0
        %777 = vmatprep.subr.bf16.mxu0 0
        %778 = vmatpush1.bf16.msra.mxu0 0
        %779 = vmatprep.subr.bf16.mxu0 0
        %780 = vmatpush1.bf16.msra.mxu0 0
        %781 = vmatprep.mubr.bf16.mxu0 0
        %782 = vmatmul.mubr.bf16.gmra.mrb[0].mxu0 %v741
        %v783 = vpop.f32.mrb[0].mxu0
        %v784 = vadd.f32 %v738, %v783
        %v785 = vpop.f32.mrb[0].mxu0
        %v786 = vadd.f32 %v738, %v785
        %v787 = vpop.f32.mrb[0].mxu0
        %v788 = vpop.f32.mrb[0].mxu0
        %789 = vdwg.mxu0
        %v790 = vmax.f32 %v784, 0.0
        %v791 = vmax.f32 %v786, 0.0
        %v792 = vld [vmem:[%s7] sm:$0xf]
        %v793 = vld [vmem:[%s7 + $0x4] sm:$0xf]
        %v794 = vld [vmem:[%s7 + $0x8] sm:$0xf]
        %v795 = vld [vmem:[%s7 + $0xc] sm:$0xf]
        %v796 = vld [vmem:[%s7 + $0x10] sm:$0xf]
        %v797 = vld [vmem:[%s7 + $0x14] sm:$0xf]
        %v798 = vpack.c.bf16 %v790, %v790
        %v799 = vpack.c.bf16 %v791, %v791
        %v800 = vld [vmem:[%s8] sm:$0xff]
        %v801 = vld [vmem:[%s8 + $0x8] sm:$0xff]
        %v802 = vld [vmem:[%s8 + $0x10] sm:$0xff]
        %v803 = vld [vmem:[%s8 + $0x18] sm:$0xff]
        %v804 = vld [vmem:[%s8 + $0x20] sm:$0xff]
        %v805 = vld [vmem:[%s8 + $0x28] sm:$0xff]
        %807 = vset.pattern.permute.xlu0 0
        %808 = vperm.xlu0 %807, %v800
        %v809 = vpop.permute.xlu0 %808
        %812 = vset.pattern.permute.xlu0 0
        %813 = vperm.xlu0 %812, %v801
        %v814 = vpop.permute.xlu0 %813
        %817 = vset.pattern.permute.xlu0 0
        %818 = vperm.xlu0 %817, %v802
        %v819 = vpop.permute.xlu0 %818
        %822 = vset.pattern.permute.xlu0 0
        %823 = vperm.xlu0 %822, %v803
        %v824 = vpop.permute.xlu0 %823
        %827 = vset.pattern.permute.xlu0 0
        %828 = vperm.xlu0 %827, %v804
        %v829 = vpop.permute.xlu0 %828
        %832 = vset.pattern.permute.xlu0 0
        %833 = vperm.xlu0 %832, %v805
        %v834 = vpop.permute.xlu0 %833
        %v842 = vunpack.c.l.b16 %v792
        %v843 = vunpack.c.l.b16 %v793
        %v844 = vunpack.c.l.b16 %v794
        %v845 = vunpack.c.l.b16 %v795
        %v846 = vunpack.c.l.b16 %v796
        %v847 = vunpack.c.l.b16 %v797
        %v848 = vpack.c.b16 %v843, %v842
        %v849 = vpack.c.b16 %v845, %v844
        %v850 = vpack.c.b16 %v847, %v846
        %vm851 = vcmask 64512
        %v853 = vsel %vm851, %v848, 0
        %v856 = vsel %vm851, %v849, 0
        %v859 = vsel %vm851, %v850, 0
        %vm861 = vcmask 1043456
        %v863 = vsel %vm861, %v798, 0
        %v866 = vsel %vm861, %v799, 0
        %868 = vmatprep.subr.bf16.mxu0 %v866
        %869 = vmatpush1.bf16.msra.mxu0 %v863
        %870 = vmatprep.subr.bf16.mxu0 0
        %871 = vmatpush1.bf16.msra.mxu0 0
        %872 = vmatprep.subr.bf16.mxu0 0
        %873 = vmatpush1.bf16.msra.mxu0 0
        %874 = vmatprep.subr.bf16.mxu0 0
        %875 = vmatpush1.bf16.msra.mxu0 0
        %876 = vmatprep.subr.bf16.mxu0 0
        %877 = vmatpush1.bf16.msra.mxu0 0
        %878 = vmatprep.subr.bf16.mxu0 0
        %879 = vmatpush1.bf16.msra.mxu0 0
        %880 = vmatprep.subr.bf16.mxu0 0
        %881 = vmatpush1.bf16.msra.mxu0 0
        %882 = vmatprep.subr.bf16.mxu0 0
        %883 = vmatpush1.bf16.msra.mxu0 0
        %884 = vmatprep.subr.bf16.mxu0 0
        %885 = vmatpush1.bf16.msra.mxu0 0
        %886 = vmatprep.subr.bf16.mxu0 0
        %887 = vmatpush1.bf16.msra.mxu0 0
        %888 = vmatprep.subr.bf16.mxu0 0
        %889 = vmatpush1.bf16.msra.mxu0 0
        %890 = vmatprep.subr.bf16.mxu0 0
        %891 = vmatpush1.bf16.msra.mxu0 0
        %892 = vmatprep.subr.bf16.mxu0 0
        %893 = vmatpush1.bf16.msra.mxu0 0
        %894 = vmatprep.subr.bf16.mxu0 0
        %895 = vmatpush1.bf16.msra.mxu0 0
        %896 = vmatprep.subr.bf16.mxu0 0
        %897 = vmatpush1.bf16.msra.mxu0 0
        %898 = vmatprep.subr.bf16.mxu0 0
        %899 = vmatpush1.bf16.msra.mxu0 0
        %900 = vmatprep.mubr.bf16.mxu0 0
        %901 = vmatmul.mubr.bf16.gmra.mrb[0].mxu0 %v853
        %v902 = vpop.f32.mrb[0].mxu0
        %v903 = vadd.f32 %v809, %v902
        %v904 = vpop.f32.mrb[0].mxu0
        %v905 = vadd.f32 %v809, %v904
        %v906 = vpop.f32.mrb[0].mxu0
        %v907 = vadd.f32 %v814, %v906
        %v908 = vpop.f32.mrb[0].mxu0
        %v909 = vadd.f32 %v814, %v908
        %910 = vmatprep.mubr.bf16.mxu0 0
        %911 = vmatmul.mubr.bf16.gmra.mrb[0].mxu0 %v856
        %v912 = vpop.f32.mrb[0].mxu0
        %v913 = vadd.f32 %v819, %v912
        %v914 = vpop.f32.mrb[0].mxu0
        %v915 = vadd.f32 %v819, %v914
        %v916 = vpop.f32.mrb[0].mxu0
        %v917 = vadd.f32 %v824, %v916
        %v918 = vpop.f32.mrb[0].mxu0
        %v919 = vadd.f32 %v824, %v918
        %920 = vmatprep.mubr.bf16.mxu0 0
        %921 = vmatmul.mubr.bf16.gmra.mrb[0].mxu0 %v859
        %v922 = vpop.f32.mrb[0].mxu0
        %v923 = vadd.f32 %v829, %v922
        %v924 = vpop.f32.mrb[0].mxu0
        %v925 = vadd.f32 %v829, %v924
        %v926 = vpop.f32.mrb[0].mxu0
        %v927 = vadd.f32 %v834, %v926
        %v928 = vpop.f32.mrb[0].mxu0
        %v929 = vadd.f32 %v834, %v928
        %930 = vdwg.mxu0
        %v931 = vmax.f32 %v903, 0.0
        %v932 = vmax.f32 %v905, 0.0
        %v933 = vmax.f32 %v907, 0.0
        %v934 = vmax.f32 %v909, 0.0
        %v935 = vmax.f32 %v913, 0.0
        %v936 = vmax.f32 %v915, 0.0
        %v937 = vmax.f32 %v917, 0.0
        %v938 = vmax.f32 %v919, 0.0
        %v939 = vmax.f32 %v923, 0.0
        %v940 = vmax.f32 %v925, 0.0
        %v941 = vmax.f32 %v927, 0.0
        %v942 = vmax.f32 %v929, 0.0
        %v943 = vld [vmem:[%s9] sm:$0xf]
        %v944 = vld [vmem:[%s9 + $0x4] sm:$0xf]
        %v945 = vld [vmem:[%s9 + $0x8] sm:$0xf]
        %v946 = vld [vmem:[%s9 + $0xc] sm:$0xf]
        %v947 = vld [vmem:[%s9 + $0x10] sm:$0xf]
        %v948 = vld [vmem:[%s9 + $0x14] sm:$0xf]
        %v949 = vpack.c.bf16 %v933, %v931
        %v950 = vpack.c.bf16 %v934, %v932
        %v951 = vpack.c.bf16 %v937, %v935
        %v952 = vpack.c.bf16 %v938, %v936
        %v953 = vpack.c.bf16 %v941, %v939
        %v954 = vpack.c.bf16 %v942, %v940
        %v955 = vld [vmem:[%s10] sm:$0xff]
        %v956 = vld [vmem:[%s10 + $0x8] sm:$0xff]
        %v957 = vld [vmem:[%s10 + $0x10] sm:$0xff]
        %v958 = vld [vmem:[%s10 + $0x18] sm:$0xff]
        %v959 = vld [vmem:[%s10 + $0x20] sm:$0xff]
        %v960 = vld [vmem:[%s10 + $0x28] sm:$0xff]
        %962 = vset.pattern.permute.xlu0 0
        %963 = vperm.xlu0 %962, %v955
        %v964 = vpop.permute.xlu0 %963
        %967 = vset.pattern.permute.xlu0 0
        %968 = vperm.xlu0 %967, %v956
        %v969 = vpop.permute.xlu0 %968
        %972 = vset.pattern.permute.xlu0 0
        %973 = vperm.xlu0 %972, %v957
        %v974 = vpop.permute.xlu0 %973
        %977 = vset.pattern.permute.xlu0 0
        %978 = vperm.xlu0 %977, %v958
        %v979 = vpop.permute.xlu0 %978
        %982 = vset.pattern.permute.xlu0 0
        %983 = vperm.xlu0 %982, %v959
        %v984 = vpop.permute.xlu0 %983
        %987 = vset.pattern.permute.xlu0 0
        %988 = vperm.xlu0 %987, %v960
        %v989 = vpop.permute.xlu0 %988
        %v997 = vunpack.c.l.b16 %v943
        %v998 = vunpack.c.l.b16 %v944
        %v999 = vunpack.c.l.b16 %v945
        %v1000 = vunpack.c.l.b16 %v946
        %v1001 = vunpack.c.l.b16 %v947
        %v1002 = vunpack.c.l.b16 %v948
        %v1003 = vpack.c.b16 %v998, %v997
        %v1004 = vpack.c.b16 %v1000, %v999
        %v1005 = vpack.c.b16 %v1002, %v1001
        %vm1006 = vcmask 392192
        %v1008 = vsel %vm1006, %v1003, 0
        %v1011 = vsel %vm1006, %v1004, 0
        %v1014 = vsel %vm1006, %v1005, 0
        %1016 = vmatprep.subr.bf16.mxu0 %v950
        %1017 = vmatpush1.bf16.msra.mxu0 %v949
        %1018 = vmatprep.subr.bf16.mxu0 %v952
        %1019 = vmatpush1.bf16.msra.mxu0 %v951
        %1020 = vmatprep.subr.bf16.mxu0 %v954
        %1021 = vmatpush1.bf16.msra.mxu0 %v953
        %1022 = vmatprep.subr.bf16.mxu0 0
        %1023 = vmatpush1.bf16.msra.mxu0 0
        %1024 = vmatprep.subr.bf16.mxu0 0
        %1025 = vmatpush1.bf16.msra.mxu0 0
        %1026 = vmatprep.subr.bf16.mxu0 0
        %1027 = vmatpush1.bf16.msra.mxu0 0
        %1028 = vmatprep.subr.bf16.mxu0 0
        %1029 = vmatpush1.bf16.msra.mxu0 0
        %1030 = vmatprep.subr.bf16.mxu0 0
        %1031 = vmatpush1.bf16.msra.mxu0 0
        %1032 = vmatprep.subr.bf16.mxu0 0
        %1033 = vmatpush1.bf16.msra.mxu0 0
        %1034 = vmatprep.subr.bf16.mxu0 0
        %1035 = vmatpush1.bf16.msra.mxu0 0
        %1036 = vmatprep.subr.bf16.mxu0 0
        %1037 = vmatpush1.bf16.msra.mxu0 0
        %1038 = vmatprep.subr.bf16.mxu0 0
        %1039 = vmatpush1.bf16.msra.mxu0 0
        %1040 = vmatprep.subr.bf16.mxu0 0
        %1041 = vmatpush1.bf16.msra.mxu0 0
        %1042 = vmatprep.subr.bf16.mxu0 0
        %1043 = vmatpush1.bf16.msra.mxu0 0
        %1044 = vmatprep.subr.bf16.mxu0 0
        %1045 = vmatpush1.bf16.msra.mxu0 0
        %1046 = vmatprep.subr.bf16.mxu0 0
        %1047 = vmatpush1.bf16.msra.mxu0 0
        %1048 = vmatprep.mubr.bf16.mxu0 0
        %1049 = vmatmul.mubr.bf16.gmra.mrb[0].mxu0 %v1008
        %v1050 = vpop.f32.mrb[0].mxu0
        %v1051 = vadd.f32 %v964, %v1050
        %v1052 = vpop.f32.mrb[0].mxu0
        %v1053 = vadd.f32 %v964, %v1052
        %v1054 = vpop.f32.mrb[0].mxu0
        %v1055 = vadd.f32 %v969, %v1054
        %v1056 = vpop.f32.mrb[0].mxu0
        %v1057 = vadd.f32 %v969, %v1056
        %1058 = vmatprep.mubr.bf16.mxu0 0
        %1059 = vmatmul.mubr.bf16.gmra.mrb[0].mxu0 %v1011
        %v1060 = vpop.f32.mrb[0].mxu0
        %v1061 = vadd.f32 %v974, %v1060
        %v1062 = vpop.f32.mrb[0].mxu0
        %v1063 = vadd.f32 %v974, %v1062
        %v1064 = vpop.f32.mrb[0].mxu0
        %v1065 = vadd.f32 %v979, %v1064
        %v1066 = vpop.f32.mrb[0].mxu0
        %v1067 = vadd.f32 %v979, %v1066
        %1068 = vmatprep.mubr.bf16.mxu0 0
        %1069 = vmatmul.mubr.bf16.gmra.mrb[0].mxu0 %v1014
        %v1070 = vpop.f32.mrb[0].mxu0
        %v1071 = vadd.f32 %v984, %v1070
        %v1072 = vpop.f32.mrb[0].mxu0
        %v1073 = vadd.f32 %v984, %v1072
        %v1074 = vpop.f32.mrb[0].mxu0
        %v1075 = vadd.f32 %v989, %v1074
        %v1076 = vpop.f32.mrb[0].mxu0
        %v1077 = vadd.f32 %v989, %v1076
        %1078 = vdwg.mxu0
        %v1079 = vmax.f32 %v1051, 0.0
        %v1080 = vmax.f32 %v1053, 0.0
        %v1081 = vmax.f32 %v1055, 0.0
        %v1082 = vmax.f32 %v1057, 0.0
        %v1083 = vmax.f32 %v1061, 0.0
        %v1084 = vmax.f32 %v1063, 0.0
        %v1085 = vmax.f32 %v1065, 0.0
        %v1086 = vmax.f32 %v1067, 0.0
        %v1087 = vmax.f32 %v1071, 0.0
        %v1088 = vmax.f32 %v1073, 0.0
        %v1089 = vmax.f32 %v1075, 0.0
        %v1090 = vmax.f32 %v1077, 0.0
        %v1091 = vld [vmem:[%s11] sm:$0x3]
        %v1092 = vpack.c.bf16 %v1081, %v1079
        %v1093 = vpack.c.bf16 %v1082, %v1080
        %v1094 = vpack.c.bf16 %v1085, %v1083
        %v1095 = vpack.c.bf16 %v1086, %v1084
        %v1096 = vpack.c.bf16 %v1089, %v1087
        %v1097 = vpack.c.bf16 %v1090, %v1088
        %v1098 = vld [vmem:[%s12] sm:$0xf]
        %1100 = vset.pattern.permute.xlu0 0
        %1101 = vperm.xlu0 %1100, %v1098
        %v1102 = vpop.permute.xlu0 %1101
        %v1105 = vsel %vm1006, %v1091, 0
        %1107 = vmatprep.subr.bf16.mxu0 %v1093
        %1108 = vmatpush1.bf16.msra.mxu0 %v1092
        %1109 = vmatprep.subr.bf16.mxu0 %v1095
        %1110 = vmatpush1.bf16.msra.mxu0 %v1094
        %1111 = vmatprep.subr.bf16.mxu0 %v1097
        %1112 = vmatpush1.bf16.msra.mxu0 %v1096
        %1113 = vmatprep.subr.bf16.mxu0 0
        %1114 = vmatpush1.bf16.msra.mxu0 0
        %1115 = vmatprep.subr.bf16.mxu0 0
        %1116 = vmatpush1.bf16.msra.mxu0 0
        %1117 = vmatprep.subr.bf16.mxu0 0
        %1118 = vmatpush1.bf16.msra.mxu0 0
        %1119 = vmatprep.subr.bf16.mxu0 0
        %1120 = vmatpush1.bf16.msra.mxu0 0
        %1121 = vmatprep.subr.bf16.mxu0 0
        %1122 = vmatpush1.bf16.msra.mxu0 0
        %1123 = vmatprep.subr.bf16.mxu0 0
        %1124 = vmatpush1.bf16.msra.mxu0 0
        %1125 = vmatprep.subr.bf16.mxu0 0
        %1126 = vmatpush1.bf16.msra.mxu0 0
        %1127 = vmatprep.subr.bf16.mxu0 0
        %1128 = vmatpush1.bf16.msra.mxu0 0
        %1129 = vmatprep.subr.bf16.mxu0 0
        %1130 = vmatpush1.bf16.msra.mxu0 0
        %1131 = vmatprep.subr.bf16.mxu0 0
        %1132 = vmatpush1.bf16.msra.mxu0 0
        %1133 = vmatprep.subr.bf16.mxu0 0
        %1134 = vmatpush1.bf16.msra.mxu0 0
        %1135 = vmatprep.subr.bf16.mxu0 0
        %1136 = vmatpush1.bf16.msra.mxu0 0
        %1137 = vmatprep.subr.bf16.mxu0 0
        %1138 = vmatpush1.bf16.msra.mxu0 0
        %1139 = vmatprep.mubr.bf16.mxu0 0
        %1140 = vmatmul.mubr.bf16.gmra.mrb[0].mxu0 %v1105
        %v1141 = vpop.f32.mrb[0].mxu0
        %v1142 = vadd.f32 %v1102, %v1141
        %v1143 = vpop.f32.mrb[0].mxu0
        %v1144 = vadd.f32 %v1102, %v1143
        %v1145 = vpop.f32.mrb[0].mxu0
        %v1146 = vpop.f32.mrb[0].mxu0
        %1147 = vdwg.mxu0
        %v1148 = vmax.f32 %v1142, 0.0
        %v1149 = vmax.f32 %v1144, 0.0
        %v1150 = vxor.u32 %v1148, 2147483648
        %v1151 = vxor.u32 %v1149, 2147483648
        %v1152 = vmul.f32 %v1150, 1.442695
        %v1153 = vpow.pop %v1152
        %v1154 = vmul.f32 %v1151, 1.442695
        %v1155 = vpow.pop %v1154
        %v1156 = vadd.f32 %v1153, 1.0
        %v1157 = vadd.f32 %v1155, 1.0
        %v1158 = vrcp.pop %v1156
        %v1159 = vmul.f32 1.0, %v1158
        %v1160 = vrcp.pop %v1157
        %v1161 = vmul.f32 1.0, %v1160
        %v1164 = vcombine.low %v1159, %v1161
        %1166 = vst [vmem:[%s447] sm:$0xff] %v1164
        %s1167 = sand.u32 %s327, 1
        %s1168 = scalar_lea.sflag [#allocation3], %s1167
        %s1169 = sand.u32 %s327, 1
        %s1170 = smul.addr %s1169, 8
        %s1171 = scalar_lea.vmem [#allocation2], %s1170
        // Predicated region
        $region73: #{tpu_custom_call.1} parent=71 // pred_check
          %p1172 = pneg %p337
        $region74: #{tpu_custom_call.1} parent=71 // pred_check_branch
          %1174 = sbr.rel (%p1172) target = $region76
        $region75: #{tpu_custom_call.1} parent=71 // pred_region
          %s1175 = smul.u32 2, %s32
          %s1177 = ssub.s32 128, 128
          %1178 = vsyncadd %s1168, %s1177
          %s1179 = smul.addr %s31, 2
          %s1180 = sadd.s32 %s1175, %s1179
          %s1181 = smul.addr %s1180, 64
          %s1182 = scalar_lea.hbm %s13, %s1181
          %s1184 = sshll.u32 %s1171, 4
          %s1185 = int_to_ptr.vmem [resolvable:$true] %s1184
          %1187 = dma.vmem_to_hbm [thread:$0]  %s1185, 128, %s1182, %s1168
        $region76: #{tpu_custom_call.1} parent=71 // pred_fallthru
          _
      $region72: #{tpu_custom_call.1} parent=5 // pred_fallthru
        _
      %p1188 = scmp.le.s32.totalorder 2, %s22
      // Predicated region
      $region77: #{tpu_custom_call.1} parent=5 // pred_check
        %p1189 = pneg %p1188
      $region78: #{tpu_custom_call.1} parent=5 // pred_check_branch
        %1191 = sbr.rel (%p1189) target = $region80
      $region79: #{tpu_custom_call.1} parent=5 // pred_region
        %s1192 = ssub.s32 %s22, 2
        // Predicated region
        $region81: #{tpu_custom_call.1} parent=79 // pred_check
          %p1193 = pneg %p343
        $region82: #{tpu_custom_call.1} parent=79 // pred_check_branch
          %1195 = sbr.rel (%p1193) target = $region84
        $region83: #{tpu_custom_call.1} parent=79 // pred_region
          %s1196 = sand.u32 %s328, 1
          %s1197 = scalar_lea.sflag [#allocation3], %s1196
          %s1198 = sand.u32 %s328, 1
          %s1199 = smul.addr %s1198, 8
          %s1200 = scalar_lea.vmem [#allocation2], %s1199
          %1201 = dma.done %s1197, 128
        $region84: #{tpu_custom_call.1} parent=79 // pred_fallthru
          _
      $region80: #{tpu_custom_call.1} parent=5 // pred_fallthru
        _
    $region6: #{tpu_custom_call.1} parent=1 // loop_footer
      %s26 = sadd.s32 1, %s22
    $region7: #{tpu_custom_call.1} parent=1 // loop_footer_branch
      %21 = sbr.rel target = $region3
    $region8: #{tpu_custom_call.1} parent=1 // loop_exit
      _
    %1202 = vsyncpa [#allocation3], 1
    %s1203 = scalar_lea.sflag [#allocation3], 1
    %1204 = vsyncpa %s1203, 1

</llo_original>
